<compile_context>
chip_gen: v5e
topology: v5e:2x2
jax: 0.10.0
libtpu: 0.0.40
codegen_flags: <defaults>
</compile_context>

<pallas_src>
import jax
import jax.numpy as jnp
from jax.experimental import pallas as pl
from jax.experimental.pallas import tpu as pltpu


def _transition_kernel(x_ref, scale_ref, shift_ref, w_ref, o_ref):
    # x_ref:     (1, TP, W, 2C)  packed activations:
    #            sublane axis m = r*(W//2) + q   (r = H-pair row, q = pooled W idx)
    #            lane axis    k = s*C + c        (s = W-pair col, c = channel)
    # scale_ref: (1, 2C)  folded BN scale, replicated for the W-pair
    # shift_ref: (1, 2C)  folded BN shift, replicated for the W-pair
    # w_ref:     (2C, Cout)  conv1x1 weight replicated for the W-pair, pre-scaled 1/4
    # o_ref:     (1, TP, W//2, Cout)
    x = x_ref[0]                                   # (TP, W, 2C)
    tp, w_full, c2 = x.shape
    half = w_full // 2
    scale = scale_ref[0]                           # (2C,)
    shift = shift_ref[0]                           # (2C,)

    # Folded BatchNorm + ReLU  (VPU elementwise).
    y = jnp.maximum(x * scale + shift, jnp.float32(0.0))

    # 2x1 pool over H: the two rows of each H-pair occupy the two contiguous
    # sublane halves -> one aligned VPU add (no strided access, no shuffles).
    yh = y[:, :half, :] + y[:, half:, :]           # (TP, W//2, 2C)

    # 1x2 pool over W + 1x1 conv + 1/4 averaging as ONE lane-dense GEMM (MXU):
    # the replicated / pre-scaled weight performs the remaining pool-sum.
    m = tp * half
    z = jnp.dot(yh.reshape(m, c2), w_ref[...],
                preferred_element_type=jnp.float32)  # (M, Cout)

    o_ref[0] = z.reshape(tp, half, -1).astype(o_ref.dtype)


def _largest_divisor_leq(n, cap):
    cap = max(1, min(n, cap))
    for d in range(cap, 0, -1):
        if n % d == 0:
            return d
    return 1


def transition_pallas(x_nchw, gamma, beta, conv_w, eps=1e-5):
    """x_nchw: (N, C, H, W); conv_w: (Cout, C) (1x1 conv, bias-free)."""
    N, C, H, W = x_nchw.shape
    Cout = conv_w.shape[0]
    assert H % 2 == 0 and W % 2 == 0

    x = x_nchw.astype(jnp.float32)

    # Train-mode BatchNorm batch statistics (biased variance), one pass over x:
    mean = jnp.mean(x, axis=(0, 2, 3))
    mean_sq = jnp.mean(x * x, axis=(0, 2, 3))
    var = mean_sq - mean * mean
    scale = gamma.astype(jnp.float32) * jax.lax.rsqrt(var + eps)   # (C,)
    shift = beta.astype(jnp.float32) - mean * scale                # (C,)

    # Layout: NCHW -> NHWC is the single unavoidable copy; the pair folding to
    # (N, H//2, W, 2C) is a free row-major reshape of that copy:
    #   (n, p, m, k) == NHWC (n, 2p + m//(W//2), 2*(m%(W//2)) + k//C, k%C)
    x_nhwc = jnp.transpose(x, (0, 2, 3, 1))                        # (N, H, W, C)
    x_k = x_nhwc.reshape(N, H // 2, W, 2 * C)

    # BN params replicated for the W-pair; conv weight replicated for the
    # W-pair and pre-scaled by 1/4 (so the GEMM also does the pool average).
    scale2 = jnp.concatenate([scale, scale]).reshape(1, 2 * C)
    shift2 = jnp.concatenate([shift, shift]).reshape(1, 2 * C)
    w_k = jnp.transpose(conv_w.astype(jnp.float32))                # (C, Cout)
    w2 = 0.25 * jnp.concatenate([w_k, w_k], axis=0)                # (2C, Cout)
    # TODO(synk): on v6e/v7x, cast x_k/w2 to bfloat16 (keep f32 accumulate) if
    # tolerance allows; kept f32 here to preserve the tight reference check.

    # H-tile the grid so DMA pipelines against compute and megacore has work
    # even when N is small.  Keep per-block input well under the v7x budget.
    P = H // 2
    row_bytes = W * 2 * C * 4
    cap = max(1, (512 * 1024) // row_bytes)
    if N < 2:
        cap = min(cap, max(1, P // 2))
    TP = _largest_divisor_leq(P, cap)

    out_pk = pl.pallas_call(
        _transition_kernel,
        out_shape=jax.ShapeDtypeStruct((N, P, W // 2, Cout), jnp.float32),
        grid=(N, P // TP),
        in_specs=[
            pl.BlockSpec((1, TP, W, 2 * C), lambda n, p: (n, p, 0, 0)),
            pl.BlockSpec((1, 2 * C), lambda n, p: (0, 0)),   # resident
            pl.BlockSpec((1, 2 * C), lambda n, p: (0, 0)),   # resident
            pl.BlockSpec((2 * C, Cout), lambda n, p: (0, 0)),  # resident
        ],
        out_specs=pl.BlockSpec((1, TP, W // 2, Cout), lambda n, p: (n, p, 0, 0)),
        compiler_params=pltpu.CompilerParams(
            dimension_semantics=("parallel", "parallel"),
            vmem_limit_bytes=32 * 1024 * 1024,
        ),
    )(x_k, scale2, shift2, w2)

    # Back to NCHW to match the PyTorch module output.
    return jnp.transpose(out_pk, (0, 3, 1, 2))


def transition_ref(x_nchw, gamma, beta, conv_w, eps=1e-5):
    """Pure-JAX reference mirroring the PyTorch forward (train-mode BN)."""
    mean = jnp.mean(x_nchw, axis=(0, 2, 3))
    var = jnp.mean((x_nchw - mean[None, :, None, None]) ** 2, axis=(0, 2, 3))
    xn = (x_nchw - mean[None, :, None, None]) / jnp.sqrt(var + eps)[None, :, None, None]
    y = jax.nn.relu(xn * gamma[None, :, None, None] + beta[None, :, None, None])
    z = jnp.einsum('nchw,oc->nohw', y, conv_w)
    Nn, Co, H, W = z.shape
    return z.reshape(Nn, Co, H // 2, 2, W // 2, 2).mean(axis=(3, 5))


if __name__ == "__main__":
    key = jax.random.PRNGKey(0)
    k1, k2, k3, k4 = jax.random.split(key, 4)

    N, C, H, W = 2, 4, 16, 16       # small shapes consistent with Transition
    Cout = 2                        # DenseNet transition typically halves channels

    x = jax.random.normal(k1, (N, C, H, W), dtype=jnp.float32)
    gamma = 1.0 + 0.1 * jax.random.normal(k2, (C,), dtype=jnp.float32)
    beta = 0.1 * jax.random.normal(k3, (C,), dtype=jnp.float32)
    # Conv2d(C, Cout, kernel_size=1, bias=False) weight: (Cout, C, 1, 1) -> (Cout, C)
    conv_w = jax.random.normal(k4, (Cout, C), dtype=jnp.float32) / jnp.sqrt(C)

    out = jax.block_until_ready(transition_pallas(x, gamma, beta, conv_w))
    ref = jax.block_until_ready(transition_ref(x, gamma, beta, conv_w))

    assert out.shape == (N, Cout, H // 2, W // 2), out.shape
    assert jnp.allclose(out, ref, atol=1e-4, rtol=1e-4), (
        float(jnp.max(jnp.abs(out - ref))))
    print("KERNEL_OK")
</pallas_src>

<mosaic_0001>
module attributes {stable_mosaic.version = 11 : i64} {
  func.func @_transition_kernel(%arg0: i32, %arg1: i32, %arg2: memref<1x8x16x8xf32, #tpu.memory_space<vmem>>, %arg3: memref<1x8xf32, #tpu.memory_space<vmem>>, %arg4: memref<1x8xf32, #tpu.memory_space<vmem>>, %arg5: memref<8x2xf32, #tpu.memory_space<vmem>>, %arg6: memref<1x8x8x2xf32, #tpu.memory_space<vmem>>) attributes {dimension_semantics = [#tpu.dimension_semantics<parallel>, #tpu.dimension_semantics<parallel>], iteration_bounds = array<i64: 2, 1>, scalar_prefetch = 0 : i64, scratch_operands = 0 : i64, tpu.core_type = #tpu.core_type<tc>, window_params = [{transform_indices = @transform_0, window_bounds = array<i64: 1, 8, 16, 8>}, {pipeline_mode = #tpu.pipeline_mode<synchronous>, transform_indices = @transform_1, window_bounds = array<i64: 1, 8>}, {pipeline_mode = #tpu.pipeline_mode<synchronous>, transform_indices = @transform_2, window_bounds = array<i64: 1, 8>}, {pipeline_mode = #tpu.pipeline_mode<synchronous>, transform_indices = @transform_3, window_bounds = array<i64: 8, 2>}, {transform_indices = @transform_4, window_bounds = array<i64: 1, 8, 8, 2>}]} {
    %c0 = arith.constant 0 : index
    %c0_0 = arith.constant 0 : index
    %c0_1 = arith.constant 0 : index
    %c0_2 = arith.constant 0 : index
    %0 = vector.load %arg2[%c0, %c0_0, %c0_1, %c0_2] : memref<1x8x16x8xf32, #tpu.memory_space<vmem>>, vector<1x8x16x8xf32>
    %1 = vector.shape_cast %0 : vector<1x8x16x8xf32> to vector<8x16x8xf32>
    %c0_3 = arith.constant 0 : index
    %c0_4 = arith.constant 0 : index
    %2 = vector.load %arg3[%c0_3, %c0_4] : memref<1x8xf32, #tpu.memory_space<vmem>>, vector<1x8xf32>
    %3 = vector.shape_cast %2 : vector<1x8xf32> to vector<8xf32>
    %c0_5 = arith.constant 0 : index
    %c0_6 = arith.constant 0 : index
    %4 = vector.load %arg4[%c0_5, %c0_6] : memref<1x8xf32, #tpu.memory_space<vmem>>, vector<1x8xf32>
    %5 = vector.shape_cast %4 : vector<1x8xf32> to vector<8xf32>
    %6 = vector.shape_cast %3 : vector<8xf32> to vector<1x1x8xf32>
    %7 = vector.broadcast %6 : vector<1x1x8xf32> to vector<8x16x8xf32>
    %8 = arith.mulf %1, %7 : vector<8x16x8xf32>
    %9 = vector.shape_cast %5 : vector<8xf32> to vector<1x1x8xf32>
    %10 = vector.broadcast %9 : vector<1x1x8xf32> to vector<8x16x8xf32>
    %11 = arith.addf %8, %10 : vector<8x16x8xf32>
    %cst = arith.constant 0.000000e+00 : f32
    %12 = vector.broadcast %cst : f32 to vector<8x16x8xf32>
    %13 = arith.maximumf %11, %12 : vector<8x16x8xf32>
    %14 = vector.extract_strided_slice %13 {offsets = [0, 0, 0], sizes = [8, 8, 8], strides = [1, 1, 1]} : vector<8x16x8xf32> to vector<8x8x8xf32>
    %15 = vector.extract_strided_slice %13 {offsets = [0, 8, 0], sizes = [8, 8, 8], strides = [1, 1, 1]} : vector<8x16x8xf32> to vector<8x8x8xf32>
    %16 = arith.addf %14, %15 : vector<8x8x8xf32>
    %17 = vector.shape_cast %16 : vector<8x8x8xf32> to vector<64x8xf32>
    %c0_7 = arith.constant 0 : index
    %c0_8 = arith.constant 0 : index
    %18 = vector.load %arg5[%c0_7, %c0_8] : memref<8x2xf32, #tpu.memory_space<vmem>>, vector<8x2xf32>
    %cst_9 = arith.constant dense<0.000000e+00> : vector<64x2xf32>
    %19 = tpu.matmul %17, %18, %cst_9 {dimension_numbers = #tpu.dot_dimension_numbers<[1], [0], [0], [1], [0, 0, 1, 1], [], []>} : vector<64x8xf32>, vector<8x2xf32>, vector<64x2xf32> -> vector<64x2xf32>
    %20 = vector.shape_cast %19 : vector<64x2xf32> to vector<8x8x2xf32>
    %c0_10 = arith.constant 0 : index
    %c0_11 = arith.constant 0 : index
    %c0_12 = arith.constant 0 : index
    %c0_13 = arith.constant 0 : index
    %21 = vector.load %arg6[%c0_10, %c0_11, %c0_12, %c0_13] : memref<1x8x8x2xf32, #tpu.memory_space<vmem>>, vector<1x8x8x2xf32>
    %22 = vector.shape_cast %21 : vector<1x8x8x2xf32> to vector<8x8x2xf32>
    %23 = vector.shape_cast %20 : vector<8x8x2xf32> to vector<1x8x8x2xf32>
    tpu.vector_store %arg6[%c0_10, %c0_11, %c0_12, %c0_13], %23 {strides = array<i32>} : memref<1x8x8x2xf32, #tpu.memory_space<vmem>>, vector<1x8x8x2xf32>,
    return
  }
  func.func @transform_0(%arg0: i32, %arg1: i32) -> (i32, i32, i32, i32) {
    %c0_i32 = arith.constant 0 : i32
    %c0_i32_0 = arith.constant 0 : i32
    %c0_i32_1 = arith.constant 0 : i32
    return %arg0, %arg1, %c0_i32, %c0_i32_0 : i32, i32, i32, i32
  }
  func.func @transform_1(%arg0: i32, %arg1: i32) -> (i32, i32) {
    %c0_i32 = arith.constant 0 : i32
    %c0_i32_0 = arith.constant 0 : i32
    %c0_i32_1 = arith.constant 0 : i32
    return %c0_i32, %c0_i32_0 : i32, i32
  }
  func.func @transform_2(%arg0: i32, %arg1: i32) -> (i32, i32) {
    %c0_i32 = arith.constant 0 : i32
    %c0_i32_0 = arith.constant 0 : i32
    %c0_i32_1 = arith.constant 0 : i32
    return %c0_i32, %c0_i32_0 : i32, i32
  }
  func.func @transform_3(%arg0: i32, %arg1: i32) -> (i32, i32) {
    %c0_i32 = arith.constant 0 : i32
    %c0_i32_0 = arith.constant 0 : i32
    %c0_i32_1 = arith.constant 0 : i32
    return %c0_i32, %c0_i32_0 : i32, i32
  }
  func.func @transform_4(%arg0: i32, %arg1: i32) -> (i32, i32, i32, i32) {
    %c0_i32 = arith.constant 0 : i32
    %c0_i32_0 = arith.constant 0 : i32
    %c0_i32_1 = arith.constant 0 : i32
    return %arg0, %arg1, %c0_i32, %c0_i32_0 : i32, i32, i32, i32
  }
}

</mosaic_0001>

<llo_original>
// kernel: tpu_custom_call.1
$region0: #{tpu_custom_call.1}
  #allocation0 [shape = 'u32[]', space=smem, size = 0x4, offset = 0x4, fixed_abs, tag = 'smem constant byte address 0x4 - core index']
  #allocation1 [shape = 'u32[72,128]{1,0:T(1,128)}', space=vmem, size = 0x9000, scoped, tag = 'internal scratch']
  %s0 = inlined_call_operand.vmem [shape: f32[2,8,16,8], index: 0, kind: input, shape index: {}]
  %s1 = inlined_call_operand.vmem [shape: f32[1,8], index: 1, kind: input, shape index: {}]
  %s2 = inlined_call_operand.vmem [shape: f32[1,8], index: 2, kind: input, shape index: {}]
  %s3 = inlined_call_operand.vmem [shape: f32[8,2], index: 3, kind: input, shape index: {}]
  %s4 = inlined_call_operand.vmem [shape: f32[2,8,8,2], index: 4, kind: output, shape index: {}]
  %s5 = sld [smem:[#allocation0]]
  $region49: #{tpu_custom_call.1} parent=0
    _
  %s7 = ssub.s32 1, %s5
  %s8 = scalar_select 0, %s7, %s5
  loop: start=0, step=1, limit=4
  $region2: #{tpu_custom_call.1} parent=0 // loop_pre_header
    _
  $region3: #{tpu_custom_call.1} parent=0 // loop_header
    %s10 = sphi 0, %s14
    %p11 = scmp.ge.s32.totalorder %s10, 4
    %s17 = sphi 0, %s29
    %s18 = sphi 0, %s25
    %s19 = sphi 0, %s17
    %s20 = sphi 0, %s18
    %s21 = sphi 0, %s19
    %s22 = sphi 0, %s20
    %s34 = sphi 0, %s36
    %s37 = sphi 0, %s34
    %s38 = sphi 0, %s37
    %s54 = sphi 0, %s38
    %s58 = sphi 0, %s58
    %s60 = sphi 0, %s58
    %s61 = sphi 0, %s60
    %s75 = sphi 0, %s61
    %s79 = sphi 0, %s79
    %s81 = sphi 0, %s79
    %s82 = sphi 0, %s81
    %s96 = sphi 0, %s82
    %s100 = sphi 0, %s100
    %s102 = sphi 0, %s100
    %s103 = sphi 0, %s102
    %s117 = sphi 0, %s103
    %s125 = sphi 0, %s127
    %s128 = sphi 0, %s125
    %s129 = sphi 0, %s128
    %s145 = sphi 0, %s129
  $region4: #{tpu_custom_call.1} parent=0 // loop_header_branch
    %13 = sbr.rel (%p11) target = $region8
  $region5: #{tpu_custom_call.1} parent=0 // loop_body
    %s15 = ssub.s32 %s10, 1
    %s16 = ssub.s32 %s10, 2
    %s23 = sadd.s32 1, %s18
    %p24 = scmp.ge.s32.totalorder %s23, 1
    %s25 = scalar_select %p24, 0, %s23
    %s26 = sadd.s32 1, %s17
    %s27 = scalar_select %p24, %s26, %s17
    %p28 = scmp.ge.s32.totalorder %s27, 2
    %s29 = scalar_select %p28, 0, %s27
    %s30 = ssub.s32 %s17, %s29
    %s31 = ssub.s32 %s18, %s25
    %s32 = sor.u32 %s30, %s31
    %p33 = scmp.eq.s32.totalorder %s32, 0
    %s35 = sadd.s32 %s34, 1
    %s36 = scalar_select %p33, %s34, %s35
    %p39 = pneg %p33
    %p40 = scmp.eq.s32.totalorder %s10, 1
    %p41 = por %p39, %p40
    %p42 = scmp.ne.s32.totalorder %s34, %s37
    %p43 = scmp.eq.s32.totalorder %s10, 0
    %p44 = por %p42, %p43
    %p45 = scmp.ne.s32.totalorder %s34, %s37
    %p46 = scmp.eq.s32.totalorder %s15, 1
    %p47 = por %p45, %p46
    %p48 = scmp.ne.s32.totalorder %s37, %s38
    %p49 = scmp.eq.s32.totalorder %s15, 0
    %p50 = por %p48, %p49
    %p51 = scmp.ne.s32.totalorder %s37, %s38
    %p52 = scmp.eq.s32.totalorder %s16, 1
    %p53 = por %p51, %p52
    %p55 = scmp.ne.s32.totalorder %s38, %s54
    %p56 = scmp.eq.s32.totalorder %s16, 0
    %p57 = por %p55, %p56
    %s59 = sadd.s32 %s58, 1
    %p62 = scmp.eq.s32.totalorder %s10, 1
    %p63 = scmp.ne.s32.totalorder %s58, %s60
    %p64 = scmp.eq.s32.totalorder %s10, 0
    %p65 = por %p63, %p64
    %p66 = scmp.ne.s32.totalorder %s58, %s60
    %p67 = scmp.eq.s32.totalorder %s15, 1
    %p68 = por %p66, %p67
    %p69 = scmp.ne.s32.totalorder %s60, %s61
    %p70 = scmp.eq.s32.totalorder %s15, 0
    %p71 = por %p69, %p70
    %p72 = scmp.ne.s32.totalorder %s60, %s61
    %p73 = scmp.eq.s32.totalorder %s16, 1
    %p74 = por %p72, %p73
    %p76 = scmp.ne.s32.totalorder %s61, %s75
    %p77 = scmp.eq.s32.totalorder %s16, 0
    %p78 = por %p76, %p77
    %s80 = sadd.s32 %s79, 1
    %p83 = scmp.eq.s32.totalorder %s10, 1
    %p84 = scmp.ne.s32.totalorder %s79, %s81
    %p85 = scmp.eq.s32.totalorder %s10, 0
    %p86 = por %p84, %p85
    %p87 = scmp.ne.s32.totalorder %s79, %s81
    %p88 = scmp.eq.s32.totalorder %s15, 1
    %p89 = por %p87, %p88
    %p90 = scmp.ne.s32.totalorder %s81, %s82
    %p91 = scmp.eq.s32.totalorder %s15, 0
    %p92 = por %p90, %p91
    %p93 = scmp.ne.s32.totalorder %s81, %s82
    %p94 = scmp.eq.s32.totalorder %s16, 1
    %p95 = por %p93, %p94
    %p97 = scmp.ne.s32.totalorder %s82, %s96
    %p98 = scmp.eq.s32.totalorder %s16, 0
    %p99 = por %p97, %p98
    %s101 = sadd.s32 %s100, 1
    %p104 = scmp.eq.s32.totalorder %s10, 1
    %p105 = scmp.ne.s32.totalorder %s100, %s102
    %p106 = scmp.eq.s32.totalorder %s10, 0
    %p107 = por %p105, %p106
    %p108 = scmp.ne.s32.totalorder %s100, %s102
    %p109 = scmp.eq.s32.totalorder %s15, 1
    %p110 = por %p108, %p109
    %p111 = scmp.ne.s32.totalorder %s102, %s103
    %p112 = scmp.eq.s32.totalorder %s15, 0
    %p113 = por %p111, %p112
    %p114 = scmp.ne.s32.totalorder %s102, %s103
    %p115 = scmp.eq.s32.totalorder %s16, 1
    %p116 = por %p114, %p115
    %p118 = scmp.ne.s32.totalorder %s103, %s117
    %p119 = scmp.eq.s32.totalorder %s16, 0
    %p120 = por %p118, %p119
    %s121 = ssub.s32 %s17, %s29
    %s122 = ssub.s32 %s18, %s25
    %s123 = sor.u32 %s121, %s122
    %p124 = scmp.eq.s32.totalorder %s123, 0
    %s126 = sadd.s32 %s125, 1
    %s127 = scalar_select %p124, %s125, %s126
    %p130 = pneg %p124
    %p131 = scmp.eq.s32.totalorder %s10, 1
    %p132 = por %p130, %p131
    %p133 = scmp.ne.s32.totalorder %s125, %s128
    %p134 = scmp.eq.s32.totalorder %s10, 0
    %p135 = por %p133, %p134
    %p136 = scmp.ne.s32.totalorder %s125, %s128
    %p137 = scmp.eq.s32.totalorder %s15, 1
    %p138 = por %p136, %p137
    %p139 = scmp.ne.s32.totalorder %s128, %s129
    %p140 = scmp.eq.s32.totalorder %s15, 0
    %p141 = por %p139, %p140
    %p142 = scmp.ne.s32.totalorder %s128, %s129
    %p143 = scmp.eq.s32.totalorder %s16, 1
    %p144 = por %p142, %p143
    %p146 = scmp.ne.s32.totalorder %s129, %s145
    %p147 = scmp.eq.s32.totalorder %s16, 0
    %p148 = por %p146, %p147
    %p149 = scmp.le.s32.totalorder 1, %s10
    %p150 = scmp.lt.s32.totalorder %s10, 3
    %p151 = pnand %p149, %p150
    %p152 = pneg %p151
    // Predicated region
    $region9: #{tpu_custom_call.1} parent=5 // pred_check
      _
    $region10: #{tpu_custom_call.1} parent=5 // pred_check_branch
      %154 = sbr.rel (%p151) target = $region12
    $region11: #{tpu_custom_call.1} parent=5 // pred_region
      %s155 = ssub.s32 %s10, 1
      // Predicated region
      $region13: #{tpu_custom_call.1} parent=11 // pred_check
        %p156 = pneg %p71
      $region14: #{tpu_custom_call.1} parent=11 // pred_check_branch
        %158 = sbr.rel (%p156) target = $region16
      $region15: #{tpu_custom_call.1} parent=11 // pred_region
        _
      $region16: #{tpu_custom_call.1} parent=11 // pred_fallthru
        _
      // Predicated region
      $region17: #{tpu_custom_call.1} parent=11 // pred_check
        %p159 = pneg %p92
      $region18: #{tpu_custom_call.1} parent=11 // pred_check_branch
        %161 = sbr.rel (%p159) target = $region20
      $region19: #{tpu_custom_call.1} parent=11 // pred_region
        _
      $region20: #{tpu_custom_call.1} parent=11 // pred_fallthru
        _
      // Predicated region
      $region21: #{tpu_custom_call.1} parent=11 // pred_check
        %p162 = pneg %p113
      $region22: #{tpu_custom_call.1} parent=11 // pred_check_branch
        %164 = sbr.rel (%p162) target = $region24
      $region23: #{tpu_custom_call.1} parent=11 // pred_region
        _
      $region24: #{tpu_custom_call.1} parent=11 // pred_fallthru
        _
    $region12: #{tpu_custom_call.1} parent=5 // pred_fallthru
      _
    %p165 = scmp.lt.s32.totalorder %s10, 2
    // Predicated region
    $region25: #{tpu_custom_call.1} parent=5 // pred_check
      %p166 = pneg %p165
    $region26: #{tpu_custom_call.1} parent=5 // pred_check_branch
      %168 = sbr.rel (%p166) target = $region28
    $region27: #{tpu_custom_call.1} parent=5 // pred_region
      // Predicated region
      $region29: #{tpu_custom_call.1} parent=27 // pred_check
        %p169 = pneg %p44
      $region30: #{tpu_custom_call.1} parent=27 // pred_check_branch
        %171 = sbr.rel (%p169) target = $region32
      $region31: #{tpu_custom_call.1} parent=27 // pred_region
        %s172 = smul.u32 8, %s18
        %p173 = scmp.lt.s32.totalorder %s17, 1
        %s174 = scalar_select %p173, %s17, 1
        %p175 = scmp.lt.s32.totalorder %s172, 7
        %s176 = scalar_select %p175, %s172, 7
        %s177 = smul.addr %s176, 2
        %s178 = smul.addr %s174, 16
        %s179 = sadd.s32 %s177, %s178
        %s180 = smul.addr %s179, 8
        %s181 = scalar_lea.vmem %s0, %s180
        %s182 = smul.u32 8, %s18
      $region32: #{tpu_custom_call.1} parent=27 // pred_fallthru
        _
    $region28: #{tpu_custom_call.1} parent=5 // pred_fallthru
      _
    %p183 = scmp.le.s32.totalorder 1, %s10
    %p184 = scmp.lt.s32.totalorder %s10, 3
    %p185 = pnand %p183, %p184
    %p186 = pneg %p185
    // Predicated region
    $region33: #{tpu_custom_call.1} parent=5 // pred_check
      _
    $region34: #{tpu_custom_call.1} parent=5 // pred_check_branch
      %188 = sbr.rel (%p185) target = $region36
    $region35: #{tpu_custom_call.1} parent=5 // pred_region
      %s189 = ssub.s32 %s10, 1
      %s190 = smul.u32 8, %s20
      %p191 = scmp.lt.s32.totalorder %s19, 1
      %s192 = scalar_select %p191, %s19, 1
      %p193 = scmp.lt.s32.totalorder %s190, 7
      %s194 = scalar_select %p193, %s190, 7
      %s195 = smul.addr %s194, 2
      %s196 = smul.addr %s192, 16
      %s197 = sadd.s32 %s195, %s196
      %s198 = smul.addr %s197, 8
      %s199 = scalar_lea.vmem %s0, %s198
      %p200 = pneg %p50
      %p201 = pneg %p47
      %p202 = pneg %p71
      %p203 = pneg %p68
      %p204 = pneg %p92
      %p205 = pneg %p89
      %p206 = pneg %p113
      %p207 = pneg %p110
      %p208 = pneg %p141
      %p209 = pneg %p138
      %s210 = smul.u32 8, %s20
      %p211 = scmp.lt.s32.totalorder %s19, 1
      %s212 = scalar_select %p211, %s19, 1
      %p213 = scmp.lt.s32.totalorder %s210, 7
      %s214 = scalar_select %p213, %s210, 7
      %s215 = smul.addr %s212, 8
      %s216 = sadd.s32 %s214, %s215
      %s217 = smul.addr %s216, 8
      %s218 = scalar_lea.vmem %s4, %s217
      %s219 = smul.u32 8, %s20
      %p220 = scmp.lt.s32.totalorder %s19, 1
      %s221 = scalar_select %p220, %s19, 1
      %p222 = scmp.lt.s32.totalorder %s219, 7
      %s223 = scalar_select %p222, %s219, 7
      %s224 = smul.addr %s223, 2
      %s225 = smul.addr %s221, 16
      %s226 = sadd.s32 %s224, %s225
      %s227 = smul.addr %s226, 8
      %s228 = scalar_lea.vmem %s0, %s227
      %s229 = smul.u32 8, %s20
      %s230 = smul.u32 8, %s20
      %p231 = scmp.lt.s32.totalorder %s19, 1
      %s232 = scalar_select %p231, %s19, 1
      %p233 = scmp.lt.s32.totalorder %s230, 7
      %s234 = scalar_select %p233, %s230, 7
      %s235 = smul.addr %s232, 8
      %s236 = sadd.s32 %s234, %s235
      %s237 = smul.addr %s236, 8
      %s238 = scalar_lea.vmem %s4, %s237
      %s239 = smul.u32 8, %s20
      %v240 = vld [vmem:[%s228] sm:$0xff]
      %v241 = vld [vmem:[%s228 + $0x8] sm:$0xff]
      %v242 = vld [vmem:[%s228 + $0x10] sm:$0xff]
      %v243 = vld [vmem:[%s228 + $0x18] sm:$0xff]
      %v244 = vld [vmem:[%s228 + $0x20] sm:$0xff]
      %v245 = vld [vmem:[%s228 + $0x28] sm:$0xff]
      %v246 = vld [vmem:[%s228 + $0x30] sm:$0xff]
      %v247 = vld [vmem:[%s228 + $0x38] sm:$0xff]
      %v248 = vld [vmem:[%s228 + $0x40] sm:$0xff]
      %v249 = vld [vmem:[%s228 + $0x48] sm:$0xff]
      %v250 = vld [vmem:[%s228 + $0x50] sm:$0xff]
      %v251 = vld [vmem:[%s228 + $0x58] sm:$0xff]
      %v252 = vld [vmem:[%s228 + $0x60] sm:$0xff]
      %v253 = vld [vmem:[%s228 + $0x68] sm:$0xff]
      %v254 = vld [vmem:[%s228 + $0x70] sm:$0xff]
      %v255 = vld [vmem:[%s228 + $0x78] sm:$0xff]
      %v256 = vld [vmem:[%s1] sm:$0x1]
      %v257 = vld [vmem:[%s2] sm:$0x1]
      %v259 = vperm.slane %v256, 0
      %v261 = vmul.f32 %v240, %v259
      %v262 = vmul.f32 %v241, %v259
      %v263 = vmul.f32 %v242, %v259
      %v264 = vmul.f32 %v243, %v259
      %v265 = vmul.f32 %v244, %v259
      %v266 = vmul.f32 %v245, %v259
      %v267 = vmul.f32 %v246, %v259
      %v268 = vmul.f32 %v247, %v259
      %v269 = vmul.f32 %v248, %v259
      %v270 = vmul.f32 %v249, %v259
      %v271 = vmul.f32 %v250, %v259
      %v272 = vmul.f32 %v251, %v259
      %v273 = vmul.f32 %v252, %v259
      %v274 = vmul.f32 %v253, %v259
      %v275 = vmul.f32 %v254, %v259
      %v276 = vmul.f32 %v255, %v259
      %v278 = vperm.slane %v257, 0
      %v280 = vadd.f32 %v261, %v278
      %v281 = vadd.f32 %v262, %v278
      %v282 = vadd.f32 %v263, %v278
      %v283 = vadd.f32 %v264, %v278
      %v284 = vadd.f32 %v265, %v278
      %v285 = vadd.f32 %v266, %v278
      %v286 = vadd.f32 %v267, %v278
      %v287 = vadd.f32 %v268, %v278
      %v288 = vadd.f32 %v269, %v278
      %v289 = vadd.f32 %v270, %v278
      %v290 = vadd.f32 %v271, %v278
      %v291 = vadd.f32 %v272, %v278
      %v292 = vadd.f32 %v273, %v278
      %v293 = vadd.f32 %v274, %v278
      %v294 = vadd.f32 %v275, %v278
      %v295 = vadd.f32 %v276, %v278
      %v296 = vmax.f32 %v280, 0.0
      %v297 = vmax.f32 %v281, 0.0
      %v298 = vmax.f32 %v282, 0.0
      %v299 = vmax.f32 %v283, 0.0
      %v300 = vmax.f32 %v284, 0.0
      %v301 = vmax.f32 %v285, 0.0
      %v302 = vmax.f32 %v286, 0.0
      %v303 = vmax.f32 %v287, 0.0
      %v304 = vmax.f32 %v288, 0.0
      %v305 = vmax.f32 %v289, 0.0
      %v306 = vmax.f32 %v290, 0.0
      %v307 = vmax.f32 %v291, 0.0
      %v308 = vmax.f32 %v292, 0.0
      %v309 = vmax.f32 %v293, 0.0
      %v310 = vmax.f32 %v294, 0.0
      %v311 = vmax.f32 %v295, 0.0
      %v312 = vadd.f32 %v296, %v297
      %v313 = vadd.f32 %v298, %v299
      %v314 = vadd.f32 %v300, %v301
      %v315 = vadd.f32 %v302, %v303
      %v316 = vadd.f32 %v304, %v305
      %v317 = vadd.f32 %v306, %v307
      %v318 = vadd.f32 %v308, %v309
      %v319 = vadd.f32 %v310, %v311
      %v320 = vld [vmem:[%s3] sm:$0xff]
      %vm321 = vcmask 64512
      %v323 = vsel %vm321, %v312, 0
      %v326 = vsel %vm321, %v313, 0
      %v329 = vsel %vm321, %v314, 0
      %v332 = vsel %vm321, %v315, 0
      %v335 = vsel %vm321, %v316, 0
      %v338 = vsel %vm321, %v317, 0
      %v341 = vsel %vm321, %v318, 0
      %v344 = vsel %vm321, %v319, 0
      %346 = vmatpush.msra.mxu0 0.0
      %347 = vmatpush.msra.mxu0 0.0
      %348 = vmatpush.msra.mxu0 0.0
      %349 = vmatpush.msra.mxu0 0.0
      %350 = vmatpush.msra.mxu0 0.0
      %351 = vmatpush.msra.mxu0 0.0
      %352 = vmatpush.msra.mxu0 0.0
      %353 = vmatpush.msra.mxu0 0.0
      %354 = vmatpush.msra.mxu0 0.0
      %355 = vmatpush.msra.mxu0 0.0
      %356 = vmatpush.msra.mxu0 0.0
      %357 = vmatpush.msra.mxu0 0.0
      %358 = vmatpush.msra.mxu0 0.0
      %359 = vmatpush.msra.mxu0 0.0
      %360 = vmatpush.msra.mxu0 0.0
      %361 = vmatpush.msra.mxu0 %v320
      %362 = vmatmul.f32.gmra.mxu0 %v323
      %v363 = vpop.f32.mrf.mxu0
      %v364 = vadd.f32 0.0, %v363
      %365 = vmatmul.f32.gmra.mxu0 %v326
      %v366 = vpop.f32.mrf.mxu0
      %v367 = vadd.f32 0.0, %v366
      %368 = vmatmul.f32.gmra.mxu0 %v329
      %v369 = vpop.f32.mrf.mxu0
      %v370 = vadd.f32 0.0, %v369
      %371 = vmatmul.f32.gmra.mxu0 %v332
      %v372 = vpop.f32.mrf.mxu0
      %v373 = vadd.f32 0.0, %v372
      %374 = vmatmul.f32.gmra.mxu0 %v335
      %v375 = vpop.f32.mrf.mxu0
      %v376 = vadd.f32 0.0, %v375
      %377 = vmatmul.f32.gmra.mxu0 %v338
      %v378 = vpop.f32.mrf.mxu0
      %v379 = vadd.f32 0.0, %v378
      %380 = vmatmul.f32.gmra.mxu0 %v341
      %v381 = vpop.f32.mrf.mxu0
      %v382 = vadd.f32 0.0, %v381
      %383 = vmatmul.f32.gmra.mxu0 %v344
      %v384 = vpop.f32.mrf.mxu0
      %v385 = vadd.f32 0.0, %v384
      %386 = vdwg.mxu0
      %vm387 = vcmask 15360
      %388 = vst.msk [vmem:[%s238] sm:$0xff] %vm387, %v364
      %389 = vst.msk [vmem:[%s238 + $0x8] sm:$0xff] %vm387, %v367
      %390 = vst.msk [vmem:[%s238 + $0x10] sm:$0xff] %vm387, %v370
      %391 = vst.msk [vmem:[%s238 + $0x18] sm:$0xff] %vm387, %v373
      %392 = vst.msk [vmem:[%s238 + $0x20] sm:$0xff] %vm387, %v376
      %393 = vst.msk [vmem:[%s238 + $0x28] sm:$0xff] %vm387, %v379
      %394 = vst.msk [vmem:[%s238 + $0x30] sm:$0xff] %vm387, %v382
      %395 = vst.msk [vmem:[%s238 + $0x38] sm:$0xff] %vm387, %v385
      %s396 = smul.u32 8, %s20
      %p397 = scmp.lt.s32.totalorder %s19, 1
      %s398 = scalar_select %p397, %s19, 1
      %p399 = scmp.lt.s32.totalorder %s396, 7
      %s400 = scalar_select %p399, %s396, 7
      %s401 = smul.addr %s398, 8
      %s402 = sadd.s32 %s400, %s401
      %s403 = smul.addr %s402, 8
      %s404 = scalar_lea.vmem %s4, %s403
      // Predicated region
      $region37: #{tpu_custom_call.1} parent=35 // pred_check
        %p405 = pneg %p138
      $region38: #{tpu_custom_call.1} parent=35 // pred_check_branch
        %407 = sbr.rel (%p405) target = $region40
      $region39: #{tpu_custom_call.1} parent=35 // pred_region
        %s408 = smul.u32 8, %s20
      $region40: #{tpu_custom_call.1} parent=35 // pred_fallthru
        _
    $region36: #{tpu_custom_call.1} parent=5 // pred_fallthru
      _
    %p409 = scmp.le.s32.totalorder 2, %s10
    // Predicated region
    $region41: #{tpu_custom_call.1} parent=5 // pred_check
      %p410 = pneg %p409
    $region42: #{tpu_custom_call.1} parent=5 // pred_check_branch
      %412 = sbr.rel (%p410) target = $region44
    $region43: #{tpu_custom_call.1} parent=5 // pred_region
      %s413 = ssub.s32 %s10, 2
      // Predicated region
      $region45: #{tpu_custom_call.1} parent=43 // pred_check
        %p414 = pneg %p144
      $region46: #{tpu_custom_call.1} parent=43 // pred_check_branch
        %416 = sbr.rel (%p414) target = $region48
      $region47: #{tpu_custom_call.1} parent=43 // pred_region
        %s417 = smul.u32 8, %s22
        %p418 = scmp.lt.s32.totalorder %s21, 1
        %s419 = scalar_select %p418, %s21, 1
        %p420 = scmp.lt.s32.totalorder %s417, 7
        %s421 = scalar_select %p420, %s417, 7
        %s422 = smul.addr %s419, 8
        %s423 = sadd.s32 %s421, %s422
        %s424 = smul.addr %s423, 8
        %s425 = scalar_lea.vmem %s4, %s424
      $region48: #{tpu_custom_call.1} parent=43 // pred_fallthru
        _
    $region44: #{tpu_custom_call.1} parent=5 // pred_fallthru
      _
  $region6: #{tpu_custom_call.1} parent=0 // loop_footer
    %s14 = sadd.s32 1, %s10
  $region7: #{tpu_custom_call.1} parent=0 // loop_footer_branch
    %9 = sbr.rel target = $region3
  $region8: #{tpu_custom_call.1} parent=0 // loop_exit
    _

</llo_original>
